<compile_context>
chip_gen: v7x
topology: tpu7x:2x2x1
jax: 0.10.0
libtpu: 0.0.40
codegen_flags: <defaults>
</compile_context>

<pallas_src>
import jax
import jax.numpy as jnp
from jax.experimental import pallas as pl
from jax.experimental.pallas import tpu as pltpu

N, C, H, W = 2, 8, 16, 16        # ch_in == ch_out (required by the residual add)
WC = W * C                       # 128 -> full 128-lane axis
EPS = 1e-5


def _make_kernel(img_h):
    def conv_res_kernel(x_ref, w_ref, b_ref, o_ref):
        # x_ref: (N*H, W*C) lane-dense (NHWC with W and C collapsed, N and H collapsed)
        x = x_ref[...].astype(jnp.float32)                           # (rows, WC)
        rows, wc = x.shape

        row = jax.lax.broadcasted_iota(jnp.int32, (rows, wc), 0) % img_h
        up_ok = row >= 1              # top neighbour exists within this image
        dn_ok = row < img_h - 1       # bottom neighbour exists within this image

        def conv3x3_bn_lrelu(src, idx):
            # 3 dy-shifted taps only; dx taps are folded into the banded weight,
            # which also encodes the left/right zero padding.
            up = jnp.where(up_ok, pltpu.roll(src, shift=1, axis=0), 0.0)
            dn = jnp.where(dn_ok, pltpu.roll(src, shift=rows - 1, axis=0), 0.0)
            taps = jnp.concatenate([up, src, dn], axis=1).astype(jnp.bfloat16)
            # Single MXU matmul, bf16 operands, f32 accumulate.  BN scale is
            # already folded into the weight; only the BN bias is added here.
            h = jnp.dot(taps, w_ref[idx], preferred_element_type=jnp.float32)
            h = h + b_ref[idx]
            return jnp.where(h >= 0, h, 0.2 * h)                     # LeakyReLU(0.2)

        h1 = conv3x3_bn_lrelu(x, 0)
        h2 = conv3x3_bn_lrelu(h1, 1)
        o_ref[...] = (h2 + x).astype(o_ref.dtype)                    # residual, full-lane store
    return conv_res_kernel


def pack_conv_res_params(w1, g1, be1, m1, v1, w2, g2, be2, m2, v2, width):
    """One-time packing (hoisted out of the forward path): BN fold + banded weight."""
    def fold_bn(g, be, m, v):
        s = g / jnp.sqrt(v + EPS)
        return s, be - m * s

    main = jnp.eye(width, dtype=jnp.float32)
    sup = jnp.eye(width, k=1, dtype=jnp.float32)    # block row w-1 feeds col w  (dx = 0)
    sub = jnp.eye(width, k=-1, dtype=jnp.float32)   # block row w+1 feeds col w  (dx = 2)

    def band_weight(wt, s):
        # HWIO (3,3,C,C) with BN scale folded into output channels, packed as a
        # (3*W*C, W*C) stack (over dy) of block-TRIdiagonal matrices so that
        #   out[r, w*C+co] = sum_{dy,dx,ci} x[r+dy-1, (w+dx-1)*C+ci] * wt[dy,dx,ci,co]
        # with the image-edge (dx) zero padding implied by the band structure.
        wt = (wt * s[None, None, None, :]).astype(jnp.float32)
        def band(dy):
            return (jnp.kron(sup, wt[dy, 0])
                    + jnp.kron(main, wt[dy, 1])
                    + jnp.kron(sub, wt[dy, 2]))
        return jnp.concatenate([band(0), band(1), band(2)], axis=0)  # (3*WC, WC)

    s1, b1 = fold_bn(g1, be1, m1, v1)
    s2, b2 = fold_bn(g2, be2, m2, v2)
    w_packed = jnp.stack([band_weight(w1, s1),
                          band_weight(w2, s2)]).astype(jnp.bfloat16)  # (2, 3*WC, WC) bf16
    b_packed = jnp.stack([jnp.tile(b1, width),
                          jnp.tile(b2, width)]).astype(jnp.float32)   # (2, WC) f32
    return w_packed, b_packed


def conv_res_forward(x_nchw, w_packed, b_packed):
    n, c, h, w = x_nchw.shape
    wc = w * c
    rows = n * h
    # NCHW -> NHWC -> lane-dense (N*H, W*C); no pre-padding (halo handled in-kernel)
    x2d = jnp.transpose(x_nchw, (0, 2, 3, 1)).reshape(rows, wc)

    cost = pl.CostEstimate(
        flops=2 * 2 * rows * (3 * wc) * wc,                 # two (rows,3WC)x(3WC,WC) matmuls
        transcendentals=0,
        bytes_accessed=2 * rows * wc * 4 + w_packed.size * 2 + b_packed.size * 4,
    )

    out2d = pl.pallas_call(
        _make_kernel(h),
        out_shape=jax.ShapeDtypeStruct((rows, wc), x2d.dtype),
        grid=(1,),                                          # whole batch, single TC
        in_specs=[
            pl.BlockSpec((rows, wc), lambda i: (0, 0)),             # activations
            pl.BlockSpec((2, 3 * wc, wc), lambda i: (0, 0, 0)),     # packed banded weights (bf16)
            pl.BlockSpec((2, wc), lambda i: (0, 0)),                # packed BN biases
        ],
        out_specs=pl.BlockSpec((rows, wc), lambda i: (0, 0)),
        compiler_params=pltpu.CompilerParams(dimension_semantics=("arbitrary",)),
        cost_estimate=cost,
    )(x2d, w_packed, b_packed)

    return jnp.transpose(out2d.reshape(n, h, w, c), (0, 3, 1, 2))    # NHWC -> NCHW


def conv_res_reference(x_nchw, w1, g1, be1, m1, v1, w2, g2, be2, m2, v2):
    x = jnp.transpose(x_nchw, (0, 2, 3, 1))
    conv = lambda hh, wt: jax.lax.conv_general_dilated(
        hh, wt, (1, 1), 'SAME', dimension_numbers=('NHWC', 'HWIO', 'NHWC'))
    hh = conv(x, w1)
    hh = (hh - m1) / jnp.sqrt(v1 + EPS) * g1 + be1
    hh = jnp.where(hh >= 0, hh, 0.2 * hh)
    hh = conv(hh, w2)
    hh = (hh - m2) / jnp.sqrt(v2 + EPS) * g2 + be2
    hh = jnp.where(hh >= 0, hh, 0.2 * hh)
    return jnp.transpose(hh + x, (0, 3, 1, 2))


if __name__ == "__main__":
    key = jax.random.PRNGKey(0)
    ks = jax.random.split(key, 11)

    x = jax.random.normal(ks[0], (N, C, H, W), jnp.float32)          # PyTorch NCHW

    w1 = jax.random.normal(ks[1], (3, 3, C, C), jnp.float32) * 0.1   # HWIO
    w2 = jax.random.normal(ks[2], (3, 3, C, C), jnp.float32) * 0.1   # HWIO
    g1 = jax.random.uniform(ks[3], (C,), jnp.float32, 0.5, 1.5)      # BN1 gamma
    be1 = jax.random.normal(ks[4], (C,), jnp.float32) * 0.1          # BN1 beta
    m1 = jax.random.normal(ks[5], (C,), jnp.float32) * 0.1           # BN1 running_mean
    v1 = jax.random.uniform(ks[6], (C,), jnp.float32, 0.5, 1.5)      # BN1 running_var
    g2 = jax.random.uniform(ks[7], (C,), jnp.float32, 0.5, 1.5)
    be2 = jax.random.normal(ks[8], (C,), jnp.float32) * 0.1
    m2 = jax.random.normal(ks[9], (C,), jnp.float32) * 0.1
    v2 = jax.random.uniform(ks[10], (C,), jnp.float32, 0.5, 1.5)

    # One-time parameter packing (hoisted out of the forward path).
    w_packed, b_packed = pack_conv_res_params(
        w1, g1, be1, m1, v1, w2, g2, be2, m2, v2, W)
    w_packed = jax.block_until_ready(w_packed)
    b_packed = jax.block_until_ready(b_packed)

    out = conv_res_forward(x, w_packed, b_packed)
    out = jax.block_until_ready(out)

    ref = conv_res_reference(x, w1, g1, be1, m1, v1, w2, g2, be2, m2, v2)
    assert out.shape == (N, C, H, W)
    # bf16 matmul operands (f32 accumulate) -> ~1e-3..1e-2 abs error vs f32 reference.
    assert jnp.allclose(out, ref, rtol=3e-2, atol=3e-2), \
        f"max abs err {jnp.max(jnp.abs(out - ref))}"

    print("KERNEL_OK")
</pallas_src>

<mosaic_0001>
module attributes {stable_mosaic.version = 11 : i64} {
  func.func @conv_res_kernel(%arg0: i32, %arg1: memref<32x128xf32, #tpu.memory_space<vmem>>, %arg2: memref<2x384x128xbf16, #tpu.memory_space<vmem>>, %arg3: memref<2x128xf32, #tpu.memory_space<vmem>>, %arg4: memref<32x128xf32, #tpu.memory_space<vmem>>) attributes {dimension_semantics = [#tpu.dimension_semantics<arbitrary>], iteration_bounds = array<i64: 1>, scalar_prefetch = 0 : i64, scratch_operands = 0 : i64, tpu.core_type = #tpu.core_type<tc>, window_params = [{pipeline_mode = #tpu.pipeline_mode<synchronous>, transform_indices = @transform_0, window_bounds = array<i64: 32, 128>}, {pipeline_mode = #tpu.pipeline_mode<synchronous>, transform_indices = @transform_1, window_bounds = array<i64: 2, 384, 128>}, {pipeline_mode = #tpu.pipeline_mode<synchronous>, transform_indices = @transform_2, window_bounds = array<i64: 2, 128>}, {pipeline_mode = #tpu.pipeline_mode<synchronous>, transform_indices = @transform_3, window_bounds = array<i64: 32, 128>}]} {
    %c0 = arith.constant 0 : index
    %c0_0 = arith.constant 0 : index
    %0 = vector.load %arg1[%c0, %c0_0] : memref<32x128xf32, #tpu.memory_space<vmem>>, vector<32x128xf32>
    %1 = tpu.iota {dimensions = array<i32: 0>} : vector<32x128xi32>
    %c16_i32 = arith.constant 16 : i32
    %c0_i32 = arith.constant 0 : i32
    %2 = arith.cmpi eq, %c16_i32, %c0_i32 : i32
    %c1_i32 = arith.constant 1 : i32
    %3 = arith.select %2, %c1_i32, %c16_i32 : i32
    %4 = vector.broadcast %3 : i32 to vector<32x128xi32>
    %5 = arith.remsi %1, %4 : vector<32x128xi32>
    %c0_i32_1 = arith.constant 0 : i32
    %6 = vector.broadcast %c0_i32_1 : i32 to vector<32x128xi32>
    %7 = arith.cmpi ne, %5, %6 : vector<32x128xi32>
    %c0_i32_2 = arith.constant 0 : i32
    %8 = vector.broadcast %c0_i32_2 : i32 to vector<32x128xi32>
    %9 = arith.cmpi slt, %5, %8 : vector<32x128xi32>
    %c0_i32_3 = arith.constant 0 : i32
    %10 = arith.cmpi slt, %3, %c0_i32_3 : i32
    %11 = vector.broadcast %10 : i1 to vector<32x128xi1>
    %12 = vector.broadcast %11 : vector<32x128xi1> to vector<32x128xi1>
    %13 = arith.xori %9, %12 : vector<32x128xi1>
    %14 = arith.andi %13, %7 : vector<32x128xi1>
    %15 = vector.broadcast %3 : i32 to vector<32x128xi32>
    %16 = arith.addi %5, %15 : vector<32x128xi32>
    %17 = arith.select %14, %16, %5 : vector<32x128xi1>, vector<32x128xi32>
    %c1_i32_4 = arith.constant 1 : i32
    %18 = vector.broadcast %c1_i32_4 : i32 to vector<32x128xi32>
    %19 = arith.cmpi sge, %17, %18 : vector<32x128xi32>
    %c15_i32 = arith.constant 15 : i32
    %20 = vector.broadcast %c15_i32 : i32 to vector<32x128xi32>
    %21 = arith.cmpi slt, %17, %20 : vector<32x128xi32>
    %c1_i32_5 = arith.constant 1 : i32
    %22 = tpu.dynamic_rotate %0 by %c1_i32_5 dim 0 : vector<32x128xf32>, i32 -> vector<32x128xf32>
    %cst = arith.constant 0.000000e+00 : f32
    %23 = vector.broadcast %cst : f32 to vector<32x128xf32>
    %24 = arith.select %19, %22, %23 : vector<32x128xi1>, vector<32x128xf32>
    %c31_i32 = arith.constant 31 : i32
    %25 = tpu.dynamic_rotate %0 by %c31_i32 dim 0 : vector<32x128xf32>, i32 -> vector<32x128xf32>
    %cst_6 = arith.constant 0.000000e+00 : f32
    %26 = vector.broadcast %cst_6 : f32 to vector<32x128xf32>
    %27 = arith.select %21, %25, %26 : vector<32x128xi1>, vector<32x128xf32>
    %28 = tpu.concatenate %24, %0, %27 in 1 : vector<32x128xf32>, vector<32x128xf32>, vector<32x128xf32> -> vector<32x384xf32>
    %29 = arith.truncf %28 : vector<32x384xf32> to vector<32x384xbf16>
    %c0_7 = arith.constant 0 : index
    %c0_8 = arith.constant 0 : index
    %c0_9 = arith.constant 0 : index
    %30 = vector.load %arg2[%c0_7, %c0_8, %c0_9] : memref<2x384x128xbf16, #tpu.memory_space<vmem>>, vector<1x384x128xbf16>
    %31 = vector.shape_cast %30 : vector<1x384x128xbf16> to vector<384x128xbf16>
    %cst_10 = arith.constant dense<0.000000e+00> : vector<32x128xf32>
    %32 = tpu.matmul %29, %31, %cst_10 {dimension_numbers = #tpu.dot_dimension_numbers<[1], [0], [0], [1], [0, 0, 1, 1], [], []>} : vector<32x384xbf16>, vector<384x128xbf16>, vector<32x128xf32> -> vector<32x128xf32>
    %c0_11 = arith.constant 0 : index
    %c0_12 = arith.constant 0 : index
    %33 = vector.load %arg3[%c0_11, %c0_12] : memref<2x128xf32, #tpu.memory_space<vmem>>, vector<1x128xf32>
    %34 = vector.shape_cast %33 : vector<1x128xf32> to vector<128xf32>
    %35 = vector.shape_cast %34 : vector<128xf32> to vector<1x128xf32>
    %36 = vector.broadcast %35 : vector<1x128xf32> to vector<32x128xf32>
    %37 = arith.addf %32, %36 : vector<32x128xf32>
    %cst_13 = arith.constant 0.000000e+00 : f32
    %38 = vector.broadcast %cst_13 : f32 to vector<32x128xf32>
    %39 = arith.cmpf oge, %37, %38 : vector<32x128xf32>
    %cst_14 = arith.constant 2.000000e-01 : f32
    %40 = vector.broadcast %cst_14 : f32 to vector<32x128xf32>
    %41 = arith.mulf %40, %37 : vector<32x128xf32>
    %42 = arith.select %39, %37, %41 : vector<32x128xi1>, vector<32x128xf32>
    %c1_i32_15 = arith.constant 1 : i32
    %43 = tpu.dynamic_rotate %42 by %c1_i32_15 dim 0 : vector<32x128xf32>, i32 -> vector<32x128xf32>
    %cst_16 = arith.constant 0.000000e+00 : f32
    %44 = vector.broadcast %cst_16 : f32 to vector<32x128xf32>
    %45 = arith.select %19, %43, %44 : vector<32x128xi1>, vector<32x128xf32>
    %c31_i32_17 = arith.constant 31 : i32
    %46 = tpu.dynamic_rotate %42 by %c31_i32_17 dim 0 : vector<32x128xf32>, i32 -> vector<32x128xf32>
    %cst_18 = arith.constant 0.000000e+00 : f32
    %47 = vector.broadcast %cst_18 : f32 to vector<32x128xf32>
    %48 = arith.select %21, %46, %47 : vector<32x128xi1>, vector<32x128xf32>
    %49 = tpu.concatenate %45, %42, %48 in 1 : vector<32x128xf32>, vector<32x128xf32>, vector<32x128xf32> -> vector<32x384xf32>
    %50 = arith.truncf %49 : vector<32x384xf32> to vector<32x384xbf16>
    %c1 = arith.constant 1 : index
    %c0_19 = arith.constant 0 : index
    %c0_20 = arith.constant 0 : index
    %51 = vector.load %arg2[%c1, %c0_19, %c0_20] : memref<2x384x128xbf16, #tpu.memory_space<vmem>>, vector<1x384x128xbf16>
    %52 = vector.shape_cast %51 : vector<1x384x128xbf16> to vector<384x128xbf16>
    %cst_21 = arith.constant dense<0.000000e+00> : vector<32x128xf32>
    %53 = tpu.matmul %50, %52, %cst_21 {dimension_numbers = #tpu.dot_dimension_numbers<[1], [0], [0], [1], [0, 0, 1, 1], [], []>} : vector<32x384xbf16>, vector<384x128xbf16>, vector<32x128xf32> -> vector<32x128xf32>
    %c1_22 = arith.constant 1 : index
    %c0_23 = arith.constant 0 : index
    %54 = vector.load %arg3[%c1_22, %c0_23] : memref<2x128xf32, #tpu.memory_space<vmem>>, vector<1x128xf32>
    %55 = vector.shape_cast %54 : vector<1x128xf32> to vector<128xf32>
    %56 = vector.shape_cast %55 : vector<128xf32> to vector<1x128xf32>
    %57 = vector.broadcast %56 : vector<1x128xf32> to vector<32x128xf32>
    %58 = arith.addf %53, %57 : vector<32x128xf32>
    %cst_24 = arith.constant 0.000000e+00 : f32
    %59 = vector.broadcast %cst_24 : f32 to vector<32x128xf32>
    %60 = arith.cmpf oge, %58, %59 : vector<32x128xf32>
    %cst_25 = arith.constant 2.000000e-01 : f32
    %61 = vector.broadcast %cst_25 : f32 to vector<32x128xf32>
    %62 = arith.mulf %61, %58 : vector<32x128xf32>
    %63 = arith.select %60, %58, %62 : vector<32x128xi1>, vector<32x128xf32>
    %64 = arith.addf %63, %0 : vector<32x128xf32>
    %c0_26 = arith.constant 0 : index
    %c0_27 = arith.constant 0 : index
    %65 = vector.load %arg4[%c0_26, %c0_27] : memref<32x128xf32, #tpu.memory_space<vmem>>, vector<32x128xf32>
    tpu.vector_store %arg4[%c0_26, %c0_27], %64 {strides = array<i32>} : memref<32x128xf32, #tpu.memory_space<vmem>>, vector<32x128xf32>,
    return
  }
  func.func @transform_0(%arg0: i32) -> (i32, i32) {
    %c0_i32 = arith.constant 0 : i32
    %c0_i32_0 = arith.constant 0 : i32
    %c0_i32_1 = arith.constant 0 : i32
    return %c0_i32, %c0_i32_0 : i32, i32
  }
  func.func @transform_1(%arg0: i32) -> (i32, i32, i32) {
    %c0_i32 = arith.constant 0 : i32
    %c0_i32_0 = arith.constant 0 : i32
    %c0_i32_1 = arith.constant 0 : i32
    %c0_i32_2 = arith.constant 0 : i32
    return %c0_i32, %c0_i32_0, %c0_i32_1 : i32, i32, i32
  }
  func.func @transform_2(%arg0: i32) -> (i32, i32) {
    %c0_i32 = arith.constant 0 : i32
    %c0_i32_0 = arith.constant 0 : i32
    %c0_i32_1 = arith.constant 0 : i32
    return %c0_i32, %c0_i32_0 : i32, i32
  }
  func.func @transform_3(%arg0: i32) -> (i32, i32) {
    %c0_i32 = arith.constant 0 : i32
    %c0_i32_0 = arith.constant 0 : i32
    %c0_i32_1 = arith.constant 0 : i32
    return %c0_i32, %c0_i32_0 : i32, i32
  }
}

</mosaic_0001>

<llo_original>
// kernel: tpu_custom_call.1
$region0: #{tpu_custom_call.1}
  #allocation0 [shape = 'u32[]', space=smem, size = 0x4, offset = 0x4, fixed_abs, tag = 'smem constant byte address 0x4 - core index']
  #allocation1 [shape = 'u32[144,128]{1,0:T(1,128)}', space=vmem, size = 0x12000, scoped, tag = 'internal scratch']
  %s0 = inlined_call_operand.hbm [shape: f32[32,128], index: 0, kind: input, shape index: {}]
  %s1 = inlined_call_operand.hbm [shape: bf16[2,384,128], index: 1, kind: input, shape index: {}]
  %s2 = inlined_call_operand.vmem [shape: f32[2,128], index: 2, kind: input, shape index: {}]
  %s3 = inlined_call_operand.hbm [shape: f32[32,128], index: 3, kind: output, shape index: {}]
  %s4 = sld [smem:[#allocation0]]
  $region30: #{tpu_custom_call.1} parent=0
    _
  %s6 = ssub.s32 1, %s4
  %s7 = scalar_select 0, %s6, %s4
  $region1: #{tpu_custom_call.1} parent=0
    #allocation2 [shape = 'u8[16384]{0}', space=vmem, size = 0x4000, scoped, tag = 'input window, operand 0, single buffered']
    #allocation3 [shape = 's32[1]{0}', space=sflag, size = 0x4, scoped, tag = 'scoped memory for tpu_custom_call.1']
    #allocation4 [shape = 's32[1]{0}', space=sflag, size = 0x4, scoped, tag = 'scoped memory for tpu_custom_call.1']
    #allocation5 [shape = 'u8[196608]{0}', space=vmem, size = 0x30000, scoped, tag = 'input window, operand 1, single buffered']
    #allocation6 [shape = 's32[1]{0}', space=sflag, size = 0x4, scoped, tag = 'scoped memory for tpu_custom_call.1']
    #allocation7 [shape = 'u8[16384]{0}', space=vmem, size = 0x4000, scoped, tag = 'output window, operand 0, single buffered']
    %8 = vsyncpa [#allocation3], 0
    %9 = vsyncpa [#allocation6], 0
    %10 = vsyncpa [#allocation4], 0
    // Predicated region
    $region2: #{tpu_custom_call.1} parent=1 // pred_check
      _
    $region3: #{tpu_custom_call.1} parent=1 // pred_check_branch
      %12 = sbr.rel (0) target = $region5
    $region4: #{tpu_custom_call.1} parent=1 // pred_region
      %s14 = ssub.s32 512, 512
      %15 = vsyncadd [#allocation3], %s14
      %s16 = sshll.u32 [#allocation2], 4
      %s17 = int_to_ptr.vmem [resolvable:$true] %s16
      %22 = dma.hbm_to_vmem [thread:$0]  %s0, 512, %s17, [#allocation3], 128, 128, 8
    $region5: #{tpu_custom_call.1} parent=1 // pred_fallthru
      _
    // Predicated region
    $region6: #{tpu_custom_call.1} parent=1 // pred_check
      _
    $region7: #{tpu_custom_call.1} parent=1 // pred_check_branch
      %24 = sbr.rel (0) target = $region9
    $region8: #{tpu_custom_call.1} parent=1 // pred_region
      %s26 = ssub.s32 6144, 6144
      %27 = vsyncadd [#allocation6], %s26
      %s28 = sshll.u32 [#allocation5], 4
      %s29 = int_to_ptr.vmem [resolvable:$true] %s28
      %34 = dma.hbm_to_vmem [thread:$0]  %s1, 6144, %s29, [#allocation6], 64, 64, 4
    $region9: #{tpu_custom_call.1} parent=1 // pred_fallthru
      _
    // Predicated region
    $region10: #{tpu_custom_call.1} parent=1 // pred_check
      _
    $region11: #{tpu_custom_call.1} parent=1 // pred_check_branch
      %36 = sbr.rel (0) target = $region13
    $region12: #{tpu_custom_call.1} parent=1 // pred_region
      _
    $region13: #{tpu_custom_call.1} parent=1 // pred_fallthru
      _
    // Predicated region
    $region14: #{tpu_custom_call.1} parent=1 // pred_check
      _
    $region15: #{tpu_custom_call.1} parent=1 // pred_check_branch
      %38 = sbr.rel (0) target = $region17
    $region16: #{tpu_custom_call.1} parent=1 // pred_region
      %39 = dma.done [#allocation3], 512
    $region17: #{tpu_custom_call.1} parent=1 // pred_fallthru
      _
    // Predicated region
    $region18: #{tpu_custom_call.1} parent=1 // pred_check
      _
    $region19: #{tpu_custom_call.1} parent=1 // pred_check_branch
      %41 = sbr.rel (0) target = $region21
    $region20: #{tpu_custom_call.1} parent=1 // pred_region
      %42 = dma.done [#allocation6], 6144
    $region21: #{tpu_custom_call.1} parent=1 // pred_fallthru
      _
    %v44 = vld [vmem:[#allocation2] sm:$0xff]
    %v45 = vld [vmem:[#allocation2 + $0x8] sm:$0xff]
    %v46 = vld [vmem:[#allocation2 + $0x10] sm:$0xff]
    %v47 = vld [vmem:[#allocation2 + $0x18] sm:$0xff]
    %v48 = vlaneseq
    %v49 = vshrl.u32 %v48, 7
    %v50 = vadd.s32 %v49, 8
    %v51 = vadd.s32 %v49, 16
    %v52 = vadd.s32 %v49, 24
    %vm53 = vcmp.lt.s32.totalorder %v49, 0
    %v54 = vsub.s32 0, %v49
    %v55 = vsel %vm53, %v54, %v49
    %v56 = vshrl.u32 %v55, 4
    %v57 = vand.u32 %v55, 15
    %v58 = vsub.s32 0, %v57
    %v59 = vsel %vm53, %v58, %v57
    %vm60 = vcmp.lt.s32.totalorder %v50, 0
    %v61 = vsub.s32 0, %v50
    %v62 = vsel %vm60, %v61, %v50
    %v63 = vshrl.u32 %v62, 4
    %v64 = vand.u32 %v62, 15
    %v65 = vsub.s32 0, %v64
    %v66 = vsel %vm60, %v65, %v64
    %vm67 = vcmp.lt.s32.totalorder %v51, 0
    %v68 = vsub.s32 0, %v51
    %v69 = vsel %vm67, %v68, %v51
    %v70 = vshrl.u32 %v69, 4
    %v71 = vand.u32 %v69, 15
    %v72 = vsub.s32 0, %v71
    %v73 = vsel %vm67, %v72, %v71
    %vm74 = vcmp.lt.s32.totalorder %v52, 0
    %v75 = vsub.s32 0, %v52
    %v76 = vsel %vm74, %v75, %v52
    %v77 = vshrl.u32 %v76, 4
    %v78 = vand.u32 %v76, 15
    %v79 = vsub.s32 0, %v78
    %v80 = vsel %vm74, %v79, %v78
    %vm81 = vcmp.ne.s32.totalorder %v59, 0
    %vm82 = vcmp.ne.s32.totalorder %v66, 0
    %vm83 = vcmp.ne.s32.totalorder %v73, 0
    %vm84 = vcmp.ne.s32.totalorder %v80, 0
    %vm85 = vcmp.lt.s32.totalorder %v59, 0
    %vm86 = vcmp.lt.s32.totalorder %v66, 0
    %vm87 = vcmp.lt.s32.totalorder %v73, 0
    %vm88 = vcmp.lt.s32.totalorder %v80, 0
    %vm89 = vmand %vm85, %vm81
    %vm90 = vmand %vm86, %vm82
    %vm91 = vmand %vm87, %vm83
    %vm92 = vmand %vm88, %vm84
    %v93 = vadd.s32 %v59, 16
    %v94 = vadd.s32 %v66, 16
    %v95 = vadd.s32 %v73, 16
    %v96 = vadd.s32 %v80, 16
    %v97 = vsel %vm89, %v93, %v59
    %v98 = vsel %vm90, %v94, %v66
    %v99 = vsel %vm91, %v95, %v73
    %v100 = vsel %vm92, %v96, %v80
    %vm101 = vcmp.ge.s32.totalorder %v97, 1
    %vm102 = vcmp.ge.s32.totalorder %v98, 1
    %vm103 = vcmp.ge.s32.totalorder %v99, 1
    %vm104 = vcmp.ge.s32.totalorder %v100, 1
    %vm105 = vcmp.lt.s32.totalorder %v97, 15
    %vm106 = vcmp.lt.s32.totalorder %v98, 15
    %vm107 = vcmp.lt.s32.totalorder %v99, 15
    %vm108 = vcmp.lt.s32.totalorder %v100, 15
    %v109 = vrot.slane %v44, 7
    %v110 = vrot.slane %v45, 7
    %v111 = vrot.slane %v46, 7
    %v112 = vrot.slane %v47, 7
    %vm113 = vcmp.lt.s32.totalorder %v49, 1
    %v114 = vsel %vm113, %v111, %v112
    %v115 = vsel %vm113, %v110, %v111
    %v116 = vsel %vm113, %v109, %v110
    %v117 = vsel %vm113, %v112, %v109
    %v118 = vsel %vm101, %v117, 0.0
    %v119 = vsel %vm102, %v116, 0.0
    %v120 = vsel %vm103, %v115, 0.0
    %v121 = vsel %vm104, %v114, 0.0
    %v122 = vrot.slane %v44, 1
    %v123 = vrot.slane %v45, 1
    %v124 = vrot.slane %v46, 1
    %v125 = vrot.slane %v47, 1
    %vm126 = vcmp.lt.s32.totalorder %v49, 7
    %v127 = vsel %vm126, %v124, %v125
    %v128 = vsel %vm126, %v123, %v124
    %v129 = vsel %vm126, %v122, %v123
    %v130 = vsel %vm126, %v125, %v122
    %v131 = vsel %vm105, %v129, 0.0
    %v132 = vsel %vm106, %v128, 0.0
    %v133 = vsel %vm107, %v127, 0.0
    %v134 = vsel %vm108, %v130, 0.0
    %v135 = vpack.c.bf16 %v119, %v118
    %v136 = vpack.c.bf16 %v45, %v44
    %v137 = vpack.c.bf16 %v132, %v131
    %v138 = vpack.c.bf16 %v121, %v120
    %v139 = vpack.c.bf16 %v47, %v46
    %v140 = vpack.c.bf16 %v134, %v133
    %v141 = vld [vmem:[#allocation5] sm:$0xf]
    %v142 = vld [vmem:[#allocation5 + $0x4] sm:$0xf]
    %v143 = vld [vmem:[#allocation5 + $0x8] sm:$0xf]
    %v144 = vld [vmem:[#allocation5 + $0xc] sm:$0xf]
    %v145 = vld [vmem:[#allocation5 + $0x10] sm:$0xf]
    %v146 = vld [vmem:[#allocation5 + $0x14] sm:$0xf]
    %v147 = vld [vmem:[#allocation5 + $0x18] sm:$0xf]
    %v148 = vld [vmem:[#allocation5 + $0x1c] sm:$0xf]
    %v149 = vld [vmem:[#allocation5 + $0x20] sm:$0xf]
    %v150 = vld [vmem:[#allocation5 + $0x24] sm:$0xf]
    %v151 = vld [vmem:[#allocation5 + $0x28] sm:$0xf]
    %v152 = vld [vmem:[#allocation5 + $0x2c] sm:$0xf]
    %v153 = vld [vmem:[#allocation5 + $0x30] sm:$0xf]
    %v154 = vld [vmem:[#allocation5 + $0x34] sm:$0xf]
    %v155 = vld [vmem:[#allocation5 + $0x38] sm:$0xf]
    %v156 = vld [vmem:[#allocation5 + $0x3c] sm:$0xf]
    %v157 = vld [vmem:[#allocation5 + $0x40] sm:$0xf]
    %v158 = vld [vmem:[#allocation5 + $0x44] sm:$0xf]
    %v159 = vld [vmem:[#allocation5 + $0x48] sm:$0xf]
    %v160 = vld [vmem:[#allocation5 + $0x4c] sm:$0xf]
    %v161 = vld [vmem:[#allocation5 + $0x50] sm:$0xf]
    %v162 = vld [vmem:[#allocation5 + $0x54] sm:$0xf]
    %v163 = vld [vmem:[#allocation5 + $0x58] sm:$0xf]
    %v164 = vld [vmem:[#allocation5 + $0x5c] sm:$0xf]
    %v165 = vld [vmem:[#allocation5 + $0x60] sm:$0xf]
    %v166 = vld [vmem:[#allocation5 + $0x64] sm:$0xf]
    %v167 = vld [vmem:[#allocation5 + $0x68] sm:$0xf]
    %v168 = vld [vmem:[#allocation5 + $0x6c] sm:$0xf]
    %v169 = vld [vmem:[#allocation5 + $0x70] sm:$0xf]
    %v170 = vld [vmem:[#allocation5 + $0x74] sm:$0xf]
    %v171 = vld [vmem:[#allocation5 + $0x78] sm:$0xf]
    %v172 = vld [vmem:[#allocation5 + $0x7c] sm:$0xf]
    %v173 = vld [vmem:[#allocation5 + $0x80] sm:$0xf]
    %v174 = vld [vmem:[#allocation5 + $0x84] sm:$0xf]
    %v175 = vld [vmem:[#allocation5 + $0x88] sm:$0xf]
    %v176 = vld [vmem:[#allocation5 + $0x8c] sm:$0xf]
    %v177 = vld [vmem:[#allocation5 + $0x90] sm:$0xf]
    %v178 = vld [vmem:[#allocation5 + $0x94] sm:$0xf]
    %v179 = vld [vmem:[#allocation5 + $0x98] sm:$0xf]
    %v180 = vld [vmem:[#allocation5 + $0x9c] sm:$0xf]
    %v181 = vld [vmem:[#allocation5 + $0xa0] sm:$0xf]
    %v182 = vld [vmem:[#allocation5 + $0xa4] sm:$0xf]
    %v183 = vld [vmem:[#allocation5 + $0xa8] sm:$0xf]
    %v184 = vld [vmem:[#allocation5 + $0xac] sm:$0xf]
    %v185 = vld [vmem:[#allocation5 + $0xb0] sm:$0xf]
    %v186 = vld [vmem:[#allocation5 + $0xb4] sm:$0xf]
    %v187 = vld [vmem:[#allocation5 + $0xb8] sm:$0xf]
    %v188 = vld [vmem:[#allocation5 + $0xbc] sm:$0xf]
    %v189 = vld [vmem:[%s2] sm:$0x1]
    %v190 = vlaneseq
    %v191 = vshrl.u32 %v190, 7
    %v192 = vsub.s32 0, %v191
    %v193 = vrot.slane %v189, %v192
    %v242 = vunpack.c.l.b16 %v141
    %v243 = vunpack.c.l.b16 %v142
    %v244 = vunpack.c.l.b16 %v143
    %v245 = vunpack.c.l.b16 %v144
    %v246 = vunpack.c.l.b16 %v145
    %v247 = vunpack.c.l.b16 %v146
    %v248 = vunpack.c.l.b16 %v147
    %v249 = vunpack.c.l.b16 %v148
    %v250 = vunpack.c.l.b16 %v149
    %v251 = vunpack.c.l.b16 %v150
    %v252 = vunpack.c.l.b16 %v151
    %v253 = vunpack.c.l.b16 %v152
    %v254 = vunpack.c.l.b16 %v153
    %v255 = vunpack.c.l.b16 %v154
    %v256 = vunpack.c.l.b16 %v155
    %v257 = vunpack.c.l.b16 %v156
    %v258 = vunpack.c.l.b16 %v157
    %v259 = vunpack.c.l.b16 %v158
    %v260 = vunpack.c.l.b16 %v159
    %v261 = vunpack.c.l.b16 %v160
    %v262 = vunpack.c.l.b16 %v161
    %v263 = vunpack.c.l.b16 %v162
    %v264 = vunpack.c.l.b16 %v163
    %v265 = vunpack.c.l.b16 %v164
    %v266 = vunpack.c.l.b16 %v165
    %v267 = vunpack.c.l.b16 %v166
    %v268 = vunpack.c.l.b16 %v167
    %v269 = vunpack.c.l.b16 %v168
    %v270 = vunpack.c.l.b16 %v169
    %v271 = vunpack.c.l.b16 %v170
    %v272 = vunpack.c.l.b16 %v171
    %v273 = vunpack.c.l.b16 %v172
    %v274 = vunpack.c.l.b16 %v173
    %v275 = vunpack.c.l.b16 %v174
    %v276 = vunpack.c.l.b16 %v175
    %v277 = vunpack.c.l.b16 %v176
    %v278 = vunpack.c.l.b16 %v177
    %v279 = vunpack.c.l.b16 %v178
    %v280 = vunpack.c.l.b16 %v179
    %v281 = vunpack.c.l.b16 %v180
    %v282 = vunpack.c.l.b16 %v181
    %v283 = vunpack.c.l.b16 %v182
    %v284 = vunpack.c.l.b16 %v183
    %v285 = vunpack.c.l.b16 %v184
    %v286 = vunpack.c.l.b16 %v185
    %v287 = vunpack.c.l.b16 %v186
    %v288 = vunpack.c.l.b16 %v187
    %v289 = vunpack.c.l.b16 %v188
    %v290 = vpack.c.b16 %v243, %v242
    %v291 = vpack.c.b16 %v245, %v244
    %v292 = vpack.c.b16 %v247, %v246
    %v293 = vpack.c.b16 %v249, %v248
    %v294 = vpack.c.b16 %v251, %v250
    %v295 = vpack.c.b16 %v253, %v252
    %v296 = vpack.c.b16 %v255, %v254
    %v297 = vpack.c.b16 %v257, %v256
    %v298 = vpack.c.b16 %v259, %v258
    %v299 = vpack.c.b16 %v261, %v260
    %v300 = vpack.c.b16 %v263, %v262
    %v301 = vpack.c.b16 %v265, %v264
    %v302 = vpack.c.b16 %v267, %v266
    %v303 = vpack.c.b16 %v269, %v268
    %v304 = vpack.c.b16 %v271, %v270
    %v305 = vpack.c.b16 %v273, %v272
    %v306 = vpack.c.b16 %v275, %v274
    %v307 = vpack.c.b16 %v277, %v276
    %v308 = vpack.c.b16 %v279, %v278
    %v309 = vpack.c.b16 %v281, %v280
    %v310 = vpack.c.b16 %v283, %v282
    %v311 = vpack.c.b16 %v285, %v284
    %v312 = vpack.c.b16 %v287, %v286
    %v313 = vpack.c.b16 %v289, %v288
    %338 = vmatprep.subr.bf16.mxu0 0
    %339 = vmatpush1.bf16.msra.mxu0 %v290
    %340 = vmatprep.subr.bf16.mxu0 0
    %341 = vmatpush1.bf16.msra.mxu0 %v291
    %342 = vmatprep.subr.bf16.mxu0 0
    %343 = vmatpush1.bf16.msra.mxu0 %v292
    %344 = vmatprep.subr.bf16.mxu0 0
    %345 = vmatpush1.bf16.msra.mxu0 %v293
    %346 = vmatprep.subr.bf16.mxu0 0
    %347 = vmatpush1.bf16.msra.mxu0 %v294
    %348 = vmatprep.subr.bf16.mxu0 0
    %349 = vmatpush1.bf16.msra.mxu0 %v295
    %350 = vmatprep.subr.bf16.mxu0 0
    %351 = vmatpush1.bf16.msra.mxu0 %v296
    %352 = vmatprep.subr.bf16.mxu0 0
    %353 = vmatpush1.bf16.msra.mxu0 %v297
    %354 = vmatprep.subr.bf16.mxu0 0
    %355 = vmatpush1.bf16.msra.mxu0 %v298
    %356 = vmatprep.subr.bf16.mxu0 0
    %357 = vmatpush1.bf16.msra.mxu0 %v299
    %358 = vmatprep.subr.bf16.mxu0 0
    %359 = vmatpush1.bf16.msra.mxu0 %v300
    %360 = vmatprep.subr.bf16.mxu0 0
    %361 = vmatpush1.bf16.msra.mxu0 %v301
    %362 = vmatprep.subr.bf16.mxu0 0
    %363 = vmatpush1.bf16.msra.mxu0 %v302
    %364 = vmatprep.subr.bf16.mxu0 0
    %365 = vmatpush1.bf16.msra.mxu0 %v303
    %366 = vmatprep.subr.bf16.mxu0 0
    %367 = vmatpush1.bf16.msra.mxu0 %v304
    %368 = vmatprep.subr.bf16.mxu0 0
    %369 = vmatpush1.bf16.msra.mxu0 %v305
    %370 = vmatprep.mubr.bf16.mxu0 %v136
    %371 = vmatmul.mubr.bf16.gmra.mrb[0].mxu0 %v135
    %v372 = vpop.f32.mrb[0].mxu0
    %v373 = vadd.f32 %v193, %v372
    %v374 = vpop.f32.mrb[0].mxu0
    %v375 = vpop.f32.mrb[0].mxu0
    %v376 = vadd.f32 %v193, %v375
    %v377 = vpop.f32.mrb[0].mxu0
    %378 = vmatprep.mubr.bf16.mxu0 %v139
    %379 = vmatmul.mubr.bf16.gmra.mrb[0].mxu0 %v138
    %v380 = vpop.f32.mrb[0].mxu0
    %v381 = vadd.f32 %v193, %v380
    %v382 = vpop.f32.mrb[0].mxu0
    %v383 = vpop.f32.mrb[0].mxu0
    %v384 = vadd.f32 %v193, %v383
    %v385 = vpop.f32.mrb[0].mxu0
    %386 = vdwg.mxu0
    %387 = vmatprep.subr.bf16.mxu0 0
    %388 = vmatpush1.bf16.msra.mxu0 %v306
    %389 = vmatprep.subr.bf16.mxu0 0
    %390 = vmatpush1.bf16.msra.mxu0 %v307
    %391 = vmatprep.subr.bf16.mxu0 0
    %392 = vmatpush1.bf16.msra.mxu0 %v308
    %393 = vmatprep.subr.bf16.mxu0 0
    %394 = vmatpush1.bf16.msra.mxu0 %v309
    %395 = vmatprep.subr.bf16.mxu0 0
    %396 = vmatpush1.bf16.msra.mxu0 %v310
    %397 = vmatprep.subr.bf16.mxu0 0
    %398 = vmatpush1.bf16.msra.mxu0 %v311
    %399 = vmatprep.subr.bf16.mxu0 0
    %400 = vmatpush1.bf16.msra.mxu0 %v312
    %401 = vmatprep.subr.bf16.mxu0 0
    %402 = vmatpush1.bf16.msra.mxu0 %v313
    %403 = vmatprep.subr.bf16.mxu0 0
    %404 = vmatpush1.bf16.msra.mxu0 0
    %405 = vmatprep.subr.bf16.mxu0 0
    %406 = vmatpush1.bf16.msra.mxu0 0
    %407 = vmatprep.subr.bf16.mxu0 0
    %408 = vmatpush1.bf16.msra.mxu0 0
    %409 = vmatprep.subr.bf16.mxu0 0
    %410 = vmatpush1.bf16.msra.mxu0 0
    %411 = vmatprep.subr.bf16.mxu0 0
    %412 = vmatpush1.bf16.msra.mxu0 0
    %413 = vmatprep.subr.bf16.mxu0 0
    %414 = vmatpush1.bf16.msra.mxu0 0
    %415 = vmatprep.subr.bf16.mxu0 0
    %416 = vmatpush1.bf16.msra.mxu0 0
    %417 = vmatprep.subr.bf16.mxu0 0
    %418 = vmatpush1.bf16.msra.mxu0 0
    %419 = vmatprep.mubr.bf16.mxu0 0
    %420 = vmatmul.mubr.bf16.gmra.mrb[0].mxu0 %v137
    %v421 = vpop.f32.mrb[0].mxu0
    %v422 = vadd.f32 %v373, %v421
    %v423 = vpop.f32.mrb[0].mxu0
    %v424 = vpop.f32.mrb[0].mxu0
    %v425 = vadd.f32 %v376, %v424
    %v426 = vpop.f32.mrb[0].mxu0
    %427 = vmatprep.mubr.bf16.mxu0 0
    %428 = vmatmul.mubr.bf16.gmra.mrb[0].mxu0 %v140
    %v429 = vpop.f32.mrb[0].mxu0
    %v430 = vadd.f32 %v381, %v429
    %v431 = vpop.f32.mrb[0].mxu0
    %v432 = vpop.f32.mrb[0].mxu0
    %v433 = vadd.f32 %v384, %v432
    %v434 = vpop.f32.mrb[0].mxu0
    %435 = vdwg.mxu0
    %vm436 = vcmp.ge.f32.partialorder %v422, 0.0
    %vm437 = vcmp.ge.f32.partialorder %v425, 0.0
    %vm438 = vcmp.ge.f32.partialorder %v430, 0.0
    %vm439 = vcmp.ge.f32.partialorder %v433, 0.0
    %v440 = vmul.f32 %v422, 0.2
    %v441 = vmul.f32 %v425, 0.2
    %v442 = vmul.f32 %v430, 0.2
    %v443 = vmul.f32 %v433, 0.2
    %v444 = vsel %vm436, %v422, %v440
    %v445 = vsel %vm437, %v425, %v441
    %v446 = vsel %vm438, %v430, %v442
    %v447 = vsel %vm439, %v433, %v443
    %v448 = vrot.slane %v444, 7
    %v449 = vrot.slane %v445, 7
    %v450 = vrot.slane %v446, 7
    %v451 = vrot.slane %v447, 7
    %v452 = vsel %vm113, %v450, %v451
    %v453 = vsel %vm113, %v449, %v450
    %v454 = vsel %vm113, %v448, %v449
    %v455 = vsel %vm113, %v451, %v448
    %v456 = vsel %vm101, %v455, 0.0
    %v457 = vsel %vm102, %v454, 0.0
    %v458 = vsel %vm103, %v453, 0.0
    %v459 = vsel %vm104, %v452, 0.0
    %v460 = vrot.slane %v444, 1
    %v461 = vrot.slane %v445, 1
    %v462 = vrot.slane %v446, 1
    %v463 = vrot.slane %v447, 1
    %v464 = vsel %vm126, %v462, %v463
    %v465 = vsel %vm126, %v461, %v462
    %v466 = vsel %vm126, %v460, %v461
    %v467 = vsel %vm126, %v463, %v460
    %v468 = vsel %vm105, %v466, 0.0
    %v469 = vsel %vm106, %v465, 0.0
    %v470 = vsel %vm107, %v464, 0.0
    %v471 = vsel %vm108, %v467, 0.0
    %v472 = vpack.c.bf16 %v457, %v456
    %v473 = vpack.c.bf16 %v445, %v444
    %v474 = vpack.c.bf16 %v469, %v468
    %v475 = vpack.c.bf16 %v459, %v458
    %v476 = vpack.c.bf16 %v447, %v446
    %v477 = vpack.c.bf16 %v471, %v470
    %s478 = scalar_lea.vmem [#allocation5], 192
    %v479 = vld [vmem:[%s478] sm:$0xf]
    %v480 = vld [vmem:[%s478 + $0x4] sm:$0xf]
    %v481 = vld [vmem:[%s478 + $0x8] sm:$0xf]
    %v482 = vld [vmem:[%s478 + $0xc] sm:$0xf]
    %v483 = vld [vmem:[%s478 + $0x10] sm:$0xf]
    %v484 = vld [vmem:[%s478 + $0x14] sm:$0xf]
    %v485 = vld [vmem:[%s478 + $0x18] sm:$0xf]
    %v486 = vld [vmem:[%s478 + $0x1c] sm:$0xf]
    %v487 = vld [vmem:[%s478 + $0x20] sm:$0xf]
    %v488 = vld [vmem:[%s478 + $0x24] sm:$0xf]
    %v489 = vld [vmem:[%s478 + $0x28] sm:$0xf]
    %v490 = vld [vmem:[%s478 + $0x2c] sm:$0xf]
    %v491 = vld [vmem:[%s478 + $0x30] sm:$0xf]
    %v492 = vld [vmem:[%s478 + $0x34] sm:$0xf]
    %v493 = vld [vmem:[%s478 + $0x38] sm:$0xf]
    %v494 = vld [vmem:[%s478 + $0x3c] sm:$0xf]
    %v495 = vld [vmem:[%s478 + $0x40] sm:$0xf]
    %v496 = vld [vmem:[%s478 + $0x44] sm:$0xf]
    %v497 = vld [vmem:[%s478 + $0x48] sm:$0xf]
    %v498 = vld [vmem:[%s478 + $0x4c] sm:$0xf]
    %v499 = vld [vmem:[%s478 + $0x50] sm:$0xf]
    %v500 = vld [vmem:[%s478 + $0x54] sm:$0xf]
    %v501 = vld [vmem:[%s478 + $0x58] sm:$0xf]
    %v502 = vld [vmem:[%s478 + $0x5c] sm:$0xf]
    %v503 = vld [vmem:[%s478 + $0x60] sm:$0xf]
    %v504 = vld [vmem:[%s478 + $0x64] sm:$0xf]
    %v505 = vld [vmem:[%s478 + $0x68] sm:$0xf]
    %v506 = vld [vmem:[%s478 + $0x6c] sm:$0xf]
    %v507 = vld [vmem:[%s478 + $0x70] sm:$0xf]
    %v508 = vld [vmem:[%s478 + $0x74] sm:$0xf]
    %v509 = vld [vmem:[%s478 + $0x78] sm:$0xf]
    %v510 = vld [vmem:[%s478 + $0x7c] sm:$0xf]
    %v511 = vld [vmem:[%s478 + $0x80] sm:$0xf]
    %v512 = vld [vmem:[%s478 + $0x84] sm:$0xf]
    %v513 = vld [vmem:[%s478 + $0x88] sm:$0xf]
    %v514 = vld [vmem:[%s478 + $0x8c] sm:$0xf]
    %v515 = vld [vmem:[%s478 + $0x90] sm:$0xf]
    %v516 = vld [vmem:[%s478 + $0x94] sm:$0xf]
    %v517 = vld [vmem:[%s478 + $0x98] sm:$0xf]
    %v518 = vld [vmem:[%s478 + $0x9c] sm:$0xf]
    %v519 = vld [vmem:[%s478 + $0xa0] sm:$0xf]
    %v520 = vld [vmem:[%s478 + $0xa4] sm:$0xf]
    %v521 = vld [vmem:[%s478 + $0xa8] sm:$0xf]
    %v522 = vld [vmem:[%s478 + $0xac] sm:$0xf]
    %v523 = vld [vmem:[%s478 + $0xb0] sm:$0xf]
    %v524 = vld [vmem:[%s478 + $0xb4] sm:$0xf]
    %v525 = vld [vmem:[%s478 + $0xb8] sm:$0xf]
    %v526 = vld [vmem:[%s478 + $0xbc] sm:$0xf]
    %v527 = vld [vmem:[%s2 + $0x1] sm:$0x1]
    %v528 = vlaneseq
    %v529 = vshrl.u32 %v528, 7
    %v530 = vsub.s32 0, %v529
    %v531 = vrot.slane %v527, %v530
    %v580 = vunpack.c.l.b16 %v479
    %v581 = vunpack.c.l.b16 %v480
    %v582 = vunpack.c.l.b16 %v481
    %v583 = vunpack.c.l.b16 %v482
    %v584 = vunpack.c.l.b16 %v483
    %v585 = vunpack.c.l.b16 %v484
    %v586 = vunpack.c.l.b16 %v485
    %v587 = vunpack.c.l.b16 %v486
    %v588 = vunpack.c.l.b16 %v487
    %v589 = vunpack.c.l.b16 %v488
    %v590 = vunpack.c.l.b16 %v489
    %v591 = vunpack.c.l.b16 %v490
    %v592 = vunpack.c.l.b16 %v491
    %v593 = vunpack.c.l.b16 %v492
    %v594 = vunpack.c.l.b16 %v493
    %v595 = vunpack.c.l.b16 %v494
    %v596 = vunpack.c.l.b16 %v495
    %v597 = vunpack.c.l.b16 %v496
    %v598 = vunpack.c.l.b16 %v497
    %v599 = vunpack.c.l.b16 %v498
    %v600 = vunpack.c.l.b16 %v499
    %v601 = vunpack.c.l.b16 %v500
    %v602 = vunpack.c.l.b16 %v501
    %v603 = vunpack.c.l.b16 %v502
    %v604 = vunpack.c.l.b16 %v503
    %v605 = vunpack.c.l.b16 %v504
    %v606 = vunpack.c.l.b16 %v505
    %v607 = vunpack.c.l.b16 %v506
    %v608 = vunpack.c.l.b16 %v507
    %v609 = vunpack.c.l.b16 %v508
    %v610 = vunpack.c.l.b16 %v509
    %v611 = vunpack.c.l.b16 %v510
    %v612 = vunpack.c.l.b16 %v511
    %v613 = vunpack.c.l.b16 %v512
    %v614 = vunpack.c.l.b16 %v513
    %v615 = vunpack.c.l.b16 %v514
    %v616 = vunpack.c.l.b16 %v515
    %v617 = vunpack.c.l.b16 %v516
    %v618 = vunpack.c.l.b16 %v517
    %v619 = vunpack.c.l.b16 %v518
    %v620 = vunpack.c.l.b16 %v519
    %v621 = vunpack.c.l.b16 %v520
    %v622 = vunpack.c.l.b16 %v521
    %v623 = vunpack.c.l.b16 %v522
    %v624 = vunpack.c.l.b16 %v523
    %v625 = vunpack.c.l.b16 %v524
    %v626 = vunpack.c.l.b16 %v525
    %v627 = vunpack.c.l.b16 %v526
    %v628 = vpack.c.b16 %v581, %v580
    %v629 = vpack.c.b16 %v583, %v582
    %v630 = vpack.c.b16 %v585, %v584
    %v631 = vpack.c.b16 %v587, %v586
    %v632 = vpack.c.b16 %v589, %v588
    %v633 = vpack.c.b16 %v591, %v590
    %v634 = vpack.c.b16 %v593, %v592
    %v635 = vpack.c.b16 %v595, %v594
    %v636 = vpack.c.b16 %v597, %v596
    %v637 = vpack.c.b16 %v599, %v598
    %v638 = vpack.c.b16 %v601, %v600
    %v639 = vpack.c.b16 %v603, %v602
    %v640 = vpack.c.b16 %v605, %v604
    %v641 = vpack.c.b16 %v607, %v606
    %v642 = vpack.c.b16 %v609, %v608
    %v643 = vpack.c.b16 %v611, %v610
    %v644 = vpack.c.b16 %v613, %v612
    %v645 = vpack.c.b16 %v615, %v614
    %v646 = vpack.c.b16 %v617, %v616
    %v647 = vpack.c.b16 %v619, %v618
    %v648 = vpack.c.b16 %v621, %v620
    %v649 = vpack.c.b16 %v623, %v622
    %v650 = vpack.c.b16 %v625, %v624
    %v651 = vpack.c.b16 %v627, %v626
    %676 = vmatprep.subr.bf16.mxu0 0
    %677 = vmatpush1.bf16.msra.mxu0 %v628
    %678 = vmatprep.subr.bf16.mxu0 0
    %679 = vmatpush1.bf16.msra.mxu0 %v629
    %680 = vmatprep.subr.bf16.mxu0 0
    %681 = vmatpush1.bf16.msra.mxu0 %v630
    %682 = vmatprep.subr.bf16.mxu0 0
    %683 = vmatpush1.bf16.msra.mxu0 %v631
    %684 = vmatprep.subr.bf16.mxu0 0
    %685 = vmatpush1.bf16.msra.mxu0 %v632
    %686 = vmatprep.subr.bf16.mxu0 0
    %687 = vmatpush1.bf16.msra.mxu0 %v633
    %688 = vmatprep.subr.bf16.mxu0 0
    %689 = vmatpush1.bf16.msra.mxu0 %v634
    %690 = vmatprep.subr.bf16.mxu0 0
    %691 = vmatpush1.bf16.msra.mxu0 %v635
    %692 = vmatprep.subr.bf16.mxu0 0
    %693 = vmatpush1.bf16.msra.mxu0 %v636
    %694 = vmatprep.subr.bf16.mxu0 0
    %695 = vmatpush1.bf16.msra.mxu0 %v637
    %696 = vmatprep.subr.bf16.mxu0 0
    %697 = vmatpush1.bf16.msra.mxu0 %v638
    %698 = vmatprep.subr.bf16.mxu0 0
    %699 = vmatpush1.bf16.msra.mxu0 %v639
    %700 = vmatprep.subr.bf16.mxu0 0
    %701 = vmatpush1.bf16.msra.mxu0 %v640
    %702 = vmatprep.subr.bf16.mxu0 0
    %703 = vmatpush1.bf16.msra.mxu0 %v641
    %704 = vmatprep.subr.bf16.mxu0 0
    %705 = vmatpush1.bf16.msra.mxu0 %v642
    %706 = vmatprep.subr.bf16.mxu0 0
    %707 = vmatpush1.bf16.msra.mxu0 %v643
    %708 = vmatprep.mubr.bf16.mxu0 %v473
    %709 = vmatmul.mubr.bf16.gmra.mrb[0].mxu0 %v472
    %v710 = vpop.f32.mrb[0].mxu0
    %v711 = vadd.f32 %v531, %v710
    %v712 = vpop.f32.mrb[0].mxu0
    %v713 = vpop.f32.mrb[0].mxu0
    %v714 = vadd.f32 %v531, %v713
    %v715 = vpop.f32.mrb[0].mxu0
    %716 = vmatprep.mubr.bf16.mxu0 %v476
    %717 = vmatmul.mubr.bf16.gmra.mrb[0].mxu0 %v475
    %v718 = vpop.f32.mrb[0].mxu0
    %v719 = vadd.f32 %v531, %v718
    %v720 = vpop.f32.mrb[0].mxu0
    %v721 = vpop.f32.mrb[0].mxu0
    %v722 = vadd.f32 %v531, %v721
    %v723 = vpop.f32.mrb[0].mxu0
    %724 = vdwg.mxu0
    %725 = vmatprep.subr.bf16.mxu0 0
    %726 = vmatpush1.bf16.msra.mxu0 %v644
    %727 = vmatprep.subr.bf16.mxu0 0
    %728 = vmatpush1.bf16.msra.mxu0 %v645
    %729 = vmatprep.subr.bf16.mxu0 0
    %730 = vmatpush1.bf16.msra.mxu0 %v646
    %731 = vmatprep.subr.bf16.mxu0 0
    %732 = vmatpush1.bf16.msra.mxu0 %v647
    %733 = vmatprep.subr.bf16.mxu0 0
    %734 = vmatpush1.bf16.msra.mxu0 %v648
    %735 = vmatprep.subr.bf16.mxu0 0
    %736 = vmatpush1.bf16.msra.mxu0 %v649
    %737 = vmatprep.subr.bf16.mxu0 0
    %738 = vmatpush1.bf16.msra.mxu0 %v650
    %739 = vmatprep.subr.bf16.mxu0 0
    %740 = vmatpush1.bf16.msra.mxu0 %v651
    %741 = vmatprep.subr.bf16.mxu0 0
    %742 = vmatpush1.bf16.msra.mxu0 0
    %743 = vmatprep.subr.bf16.mxu0 0
    %744 = vmatpush1.bf16.msra.mxu0 0
    %745 = vmatprep.subr.bf16.mxu0 0
    %746 = vmatpush1.bf16.msra.mxu0 0
    %747 = vmatprep.subr.bf16.mxu0 0
    %748 = vmatpush1.bf16.msra.mxu0 0
    %749 = vmatprep.subr.bf16.mxu0 0
    %750 = vmatpush1.bf16.msra.mxu0 0
    %751 = vmatprep.subr.bf16.mxu0 0
    %752 = vmatpush1.bf16.msra.mxu0 0
    %753 = vmatprep.subr.bf16.mxu0 0
    %754 = vmatpush1.bf16.msra.mxu0 0
    %755 = vmatprep.subr.bf16.mxu0 0
    %756 = vmatpush1.bf16.msra.mxu0 0
    %757 = vmatprep.mubr.bf16.mxu0 0
    %758 = vmatmul.mubr.bf16.gmra.mrb[0].mxu0 %v474
    %v759 = vpop.f32.mrb[0].mxu0
    %v760 = vadd.f32 %v711, %v759
    %v761 = vpop.f32.mrb[0].mxu0
    %v762 = vpop.f32.mrb[0].mxu0
    %v763 = vadd.f32 %v714, %v762
    %v764 = vpop.f32.mrb[0].mxu0
    %765 = vmatprep.mubr.bf16.mxu0 0
    %766 = vmatmul.mubr.bf16.gmra.mrb[0].mxu0 %v477
    %v767 = vpop.f32.mrb[0].mxu0
    %v768 = vadd.f32 %v719, %v767
    %v769 = vpop.f32.mrb[0].mxu0
    %v770 = vpop.f32.mrb[0].mxu0
    %v771 = vadd.f32 %v722, %v770
    %v772 = vpop.f32.mrb[0].mxu0
    %773 = vdwg.mxu0
    %vm774 = vcmp.ge.f32.partialorder %v760, 0.0
    %vm775 = vcmp.ge.f32.partialorder %v763, 0.0
    %vm776 = vcmp.ge.f32.partialorder %v768, 0.0
    %vm777 = vcmp.ge.f32.partialorder %v771, 0.0
    %v778 = vmul.f32 %v760, 0.2
    %v779 = vmul.f32 %v763, 0.2
    %v780 = vmul.f32 %v768, 0.2
    %v781 = vmul.f32 %v771, 0.2
    %v782 = vsel %vm774, %v760, %v778
    %v783 = vsel %vm775, %v763, %v779
    %v784 = vsel %vm776, %v768, %v780
    %v785 = vsel %vm777, %v771, %v781
    %v786 = vadd.f32 %v782, %v44
    %v787 = vadd.f32 %v783, %v45
    %v788 = vadd.f32 %v784, %v46
    %v789 = vadd.f32 %v785, %v47
    %790 = vst [vmem:[#allocation7] sm:$0xff] %v786
    %791 = vst [vmem:[#allocation7 + $0x8] sm:$0xff] %v787
    %792 = vst [vmem:[#allocation7 + $0x10] sm:$0xff] %v788
    %793 = vst [vmem:[#allocation7 + $0x18] sm:$0xff] %v789
    // Predicated region
    $region22: #{tpu_custom_call.1} parent=1 // pred_check
      _
    $region23: #{tpu_custom_call.1} parent=1 // pred_check_branch
      %795 = sbr.rel (0) target = $region25
    $region24: #{tpu_custom_call.1} parent=1 // pred_region
      %s797 = ssub.s32 512, 512
      %798 = vsyncadd [#allocation4], %s797
      %s799 = sshll.u32 [#allocation7], 4
      %s800 = int_to_ptr.vmem [resolvable:$true] %s799
      %805 = dma.vmem_to_hbm [thread:$0]  %s800, 512, %s3, [#allocation4], 128, 128, 8
    $region25: #{tpu_custom_call.1} parent=1 // pred_fallthru
      _
    // Predicated region
    $region26: #{tpu_custom_call.1} parent=1 // pred_check
      _
    $region27: #{tpu_custom_call.1} parent=1 // pred_check_branch
      %807 = sbr.rel (0) target = $region29
    $region28: #{tpu_custom_call.1} parent=1 // pred_region
      %808 = dma.done [#allocation4], 512
    $region29: #{tpu_custom_call.1} parent=1 // pred_fallthru
      _
    %809 = vsyncpa [#allocation3], 1
    %810 = vsyncpa [#allocation6], 1
    %811 = vsyncpa [#allocation4], 1

</llo_original>
